<compile_context>
chip_gen: v6e
topology: v6e:2x2x1
jax: 0.10.0
libtpu: 0.0.40
codegen_flags: <defaults>
</compile_context>

<pallas_src>
import functools

import jax
import jax.numpy as jnp
from jax.experimental import pallas as pl
from jax.experimental.pallas import tpu as pltpu

_MiB = 1024 * 1024


def _vmem_capacity_bytes():
    """Per-core VMEM capacity; conservative fallback if the query fails."""
    try:
        cap = getattr(pltpu.get_tpu_info(), "vmem_capacity_bytes", None)
        if cap:
            return int(cap)
    except Exception:
        pass
    return 64 * _MiB   # v7x per-TC size — safe lower bound for v5e/v6e too


def _pick_tile_rows(rows, hidden, dtype):
    """Row-tile size.

    Budget: per tile row we keep
      - 2x input + 2x output double-buffered pipeline blocks (input dtype)
      - ~3 live (tile, H) f32 temporaries inside the kernel (x, xc, epilogue)
    and cap the total at ~40 MiB so v7x (64 MiB/TC) never spills; the block
    itself targets 2-4 MiB, which already sits at ~85% of the HBM roofline.
    """
    itemsize = jnp.dtype(dtype).itemsize
    sublane = 16 if itemsize == 2 else 8          # bf16 packs 16 rows per vreg
    vmem = _vmem_capacity_bytes()

    bytes_per_row = (4 * itemsize + 3 * 4) * hidden      # pipeline + f32 temps
    budget = min(int(0.6 * vmem), 40 * _MiB)              # v7x-safe ceiling

    tile_from_block = (4 * _MiB) // (hidden * itemsize)   # ~2-4 MiB block
    tile_from_vmem = budget // bytes_per_row
    tile = min(tile_from_block, tile_from_vmem)
    tile = max(sublane, (tile // sublane) * sublane)
    tile = min(tile, 2048)

    rows_ceil = ((rows + sublane - 1) // sublane) * sublane
    tile = min(tile, max(sublane, rows_ceil))

    # v7x: guarantee grid >= 2 so ("parallel",) splits rows across both TCs.
    while tile > sublane and rows <= tile:
        tile = max(sublane, ((tile // 2) // sublane) * sublane)
    return tile


def _ln_kernel(x_ref, gamma_ref, beta_ref, o_ref, *, eps, hidden):
    """Fast path: statistics over all `hidden` units (no mask input)."""
    x = x_ref[...].astype(jnp.float32)            # (tile, H)
    g = gamma_ref[...].astype(jnp.float32)        # (1, H)
    b = beta_ref[...].astype(jnp.float32)         # (1, H)

    mean = jnp.sum(x, axis=-1, keepdims=True) * (1.0 / hidden)          # (tile, 1)
    xc = x - mean
    var = jnp.sum(xc * xc, axis=-1, keepdims=True) * (1.0 / (hidden - 1.0))
    inv = 1.0 / (jnp.sqrt(var) + eps)             # exact, per-row (tile, 1) only
    o_ref[...] = (g * (xc * inv) + b).astype(o_ref.dtype)


def _ln_kernel_masked(x_ref, gamma_ref, beta_ref, mask_ref, o_ref, *, eps):
    """weight_squeeze path: mean/std over the hidden units where mask == 1."""
    x = x_ref[...].astype(jnp.float32)            # (tile, H)
    g = gamma_ref[...].astype(jnp.float32)        # (1, H)
    b = beta_ref[...].astype(jnp.float32)         # (1, H)
    m = mask_ref[...].astype(jnp.float32)         # (1, H), 0/1 selection mask

    count = jnp.sum(m, axis=-1, keepdims=True)                          # (1, 1)
    mean = jnp.sum(x * m, axis=-1, keepdims=True) / count               # (tile, 1)
    xc = x - mean
    d = xc * m
    # NOTE: count <= 1 yields inf/NaN, matching torch.std over <2 selected units.
    var = jnp.sum(d * d, axis=-1, keepdims=True) / (count - 1.0)
    inv = 1.0 / (jnp.sqrt(var) + eps)             # exact, per-row (tile, 1) only
    o_ref[...] = (g * (xc * inv) + b).astype(o_ref.dtype)


def layer_norm_pallas(x, gamma, beta, mask=None, eps=1e-6):
    """x: (..., H). gamma/beta: (H,). mask: optional (H,) 0/1 selection mask."""
    orig_shape = x.shape
    H = orig_shape[-1]
    rows = 1
    for d in orig_shape[:-1]:
        rows *= d
    x2 = x.reshape(rows, H)
    gamma2 = gamma.reshape(1, H)
    beta2 = beta.reshape(1, H)

    tile = _pick_tile_rows(rows, H, x.dtype)
    # Ragged grid: Pallas masks the stores of the partial last block; padded
    # rows of the last input block only produce garbage in rows that are
    # never written back (stats are strictly per-row). No HBM-side padding.
    grid = (pl.cdiv(rows, tile),)

    # Scoped-VMEM ceiling, computed from the actual working set:
    # double-buffered in/out blocks + in-kernel f32 temporaries + headroom.
    itemsize = jnp.dtype(x.dtype).itemsize
    in_block = tile * H * itemsize
    out_block = in_block
    f32_scratch = 3 * tile * H * 4
    vmem_limit = 2 * in_block + 2 * out_block + f32_scratch + 4 * _MiB
    vmem_limit = int(min(max(vmem_limit, 32 * _MiB),
                         0.9 * _vmem_capacity_bytes()))

    compiler_params = pltpu.CompilerParams(
        dimension_semantics=("parallel",),       # shard row loop across TCs (v7x)
        vmem_limit_bytes=vmem_limit)

    row_spec = pl.BlockSpec((tile, H), lambda i: (i, 0))
    vec_spec = pl.BlockSpec((1, H), lambda i: (0, 0))

    if mask is None:
        kernel = functools.partial(_ln_kernel, eps=eps, hidden=float(H))
        in_specs = [row_spec, vec_spec, vec_spec]
        args = (x2, gamma2, beta2)
    else:
        kernel = functools.partial(_ln_kernel_masked, eps=eps)
        in_specs = [row_spec, vec_spec, vec_spec, vec_spec]
        args = (x2, gamma2, beta2, mask.reshape(1, H).astype(jnp.float32))

    out = pl.pallas_call(
        kernel,
        out_shape=jax.ShapeDtypeStruct((rows, H), x.dtype),
        grid_spec=pltpu.PrefetchScalarGridSpec(
            num_scalar_prefetch=0,
            grid=grid,
            in_specs=in_specs,
            out_specs=row_spec),
        compiler_params=compiler_params,
    )(*args)

    return out.reshape(orig_shape)


def layer_norm_forward(x, gamma, beta, mask_name, mask_dict, current_step,
                       *, weight_squeeze, w_step, eps=1e-6):
    """Mirrors LayerNorm.forward; branch selection is plain Python glue."""
    if weight_squeeze is True and current_step > w_step:
        mask = mask_dict[mask_name].astype(jnp.float32)   # bool -> 0/1 selection
        return layer_norm_pallas(x, gamma, beta, mask=mask, eps=eps)
    return layer_norm_pallas(x, gamma, beta, mask=None, eps=eps)


def _reference(x, gamma, beta, mask, eps=1e-6):
    x = x.astype(jnp.float32)
    m = mask.astype(jnp.float32)
    count = jnp.sum(m)
    mean = jnp.sum(x * m, axis=-1, keepdims=True) / count
    diff = (x - mean) * m
    var = jnp.sum(diff * diff, axis=-1, keepdims=True) / (count - 1.0)
    std = jnp.sqrt(var)
    return gamma * (x - mean) / (std + eps) + beta


if __name__ == "__main__":
    key = jax.random.PRNGKey(0)
    batch, seq, hidden = 2, 8, 32

    kx, km = jax.random.split(key)
    x = jax.random.normal(kx, (batch, seq, hidden), dtype=jnp.float32)

    # Deterministic parameter init per the module's __init__: gamma=ones, beta=zeros.
    gamma = jnp.ones((hidden,), dtype=jnp.float32)
    beta = jnp.zeros((hidden,), dtype=jnp.float32)

    # Synthetic mask dict for the weight_squeeze branch.
    mask_dict = {"ln_mask": jax.random.bernoulli(km, 0.5, (hidden,))}

    # Exact per-row divide in the kernel -> tight tolerances vs the reference.

    # Branch 1: default path (weight_squeeze=False) -> mask-free fast kernel.
    out_default = layer_norm_forward(
        x, gamma, beta, "ln_mask", mask_dict, current_step=10,
        weight_squeeze=False, w_step=100)
    jax.block_until_ready(out_default)
    ref_default = _reference(x, gamma, beta, jnp.ones((hidden,), jnp.float32))
    assert jnp.allclose(out_default, ref_default, atol=1e-5, rtol=1e-5)

    # Branch 2: weight_squeeze path (masked mean/std over selected hidden units).
    out_squeeze = layer_norm_forward(
        x, gamma, beta, "ln_mask", mask_dict, current_step=200,
        weight_squeeze=True, w_step=100)
    jax.block_until_ready(out_squeeze)
    ref_squeeze = _reference(x, gamma, beta, mask_dict["ln_mask"])
    assert jnp.allclose(out_squeeze, ref_squeeze, atol=1e-5, rtol=1e-5)

    print("KERNEL_OK")
</pallas_src>

<mosaic_0001>
module attributes {stable_mosaic.version = 11 : i64} {
  func.func @_ln_kernel(%arg0: i32, %arg1: memref<8x32xf32, #tpu.memory_space<vmem>>, %arg2: memref<1x32xf32, #tpu.memory_space<vmem>>, %arg3: memref<1x32xf32, #tpu.memory_space<vmem>>, %arg4: memref<8x32xf32, #tpu.memory_space<vmem>>) attributes {dimension_semantics = [#tpu.dimension_semantics<parallel>], iteration_bounds = array<i64: 2>, scalar_prefetch = 0 : i64, scratch_operands = 0 : i64, tpu.core_type = #tpu.core_type<tc>, window_params = [{transform_indices = @transform_0, window_bounds = array<i64: 8, 32>}, {pipeline_mode = #tpu.pipeline_mode<synchronous>, transform_indices = @transform_1, window_bounds = array<i64: 1, 32>}, {pipeline_mode = #tpu.pipeline_mode<synchronous>, transform_indices = @transform_2, window_bounds = array<i64: 1, 32>}, {transform_indices = @transform_3, window_bounds = array<i64: 8, 32>}]} {
    %c0 = arith.constant 0 : index
    %c0_0 = arith.constant 0 : index
    %0 = vector.load %arg1[%c0, %c0_0] : memref<8x32xf32, #tpu.memory_space<vmem>>, vector<8x32xf32>
    %c0_1 = arith.constant 0 : index
    %c0_2 = arith.constant 0 : index
    %1 = vector.load %arg2[%c0_1, %c0_2] : memref<1x32xf32, #tpu.memory_space<vmem>>, vector<1x32xf32>
    %c0_3 = arith.constant 0 : index
    %c0_4 = arith.constant 0 : index
    %2 = vector.load %arg3[%c0_3, %c0_4] : memref<1x32xf32, #tpu.memory_space<vmem>>, vector<1x32xf32>
    %cst = arith.constant dense<0.000000e+00> : vector<8xf32>
    %3 = vector.multi_reduction <add>, %0, %cst [1] : vector<8x32xf32> to vector<8xf32>
    %4 = vector.shape_cast %3 : vector<8xf32> to vector<8x1xf32>
    %cst_5 = arith.constant 3.125000e-02 : f32
    %5 = vector.broadcast %cst_5 : f32 to vector<8x1xf32>
    %6 = arith.mulf %4, %5 : vector<8x1xf32>
    %7 = vector.broadcast %6 : vector<8x1xf32> to vector<8x32xf32>
    %8 = arith.subf %0, %7 : vector<8x32xf32>
    %9 = arith.mulf %8, %8 : vector<8x32xf32>
    %cst_6 = arith.constant dense<0.000000e+00> : vector<8xf32>
    %10 = vector.multi_reduction <add>, %9, %cst_6 [1] : vector<8x32xf32> to vector<8xf32>
    %11 = vector.shape_cast %10 : vector<8xf32> to vector<8x1xf32>
    %cst_7 = arith.constant 0.0322580636 : f32
    %12 = vector.broadcast %cst_7 : f32 to vector<8x1xf32>
    %13 = arith.mulf %11, %12 : vector<8x1xf32>
    %14 = math.sqrt %13 : vector<8x1xf32>
    %cst_8 = arith.constant 9.99999997E-7 : f32
    %15 = vector.broadcast %cst_8 : f32 to vector<8x1xf32>
    %16 = arith.addf %14, %15 : vector<8x1xf32>
    %cst_9 = arith.constant 1.000000e+00 : f32
    %17 = vector.broadcast %cst_9 : f32 to vector<8x1xf32>
    %18 = arith.divf %17, %16 : vector<8x1xf32>
    %19 = vector.broadcast %18 : vector<8x1xf32> to vector<8x32xf32>
    %20 = arith.mulf %8, %19 : vector<8x32xf32>
    %21 = vector.broadcast %1 : vector<1x32xf32> to vector<8x32xf32>
    %22 = arith.mulf %21, %20 : vector<8x32xf32>
    %23 = vector.broadcast %2 : vector<1x32xf32> to vector<8x32xf32>
    %24 = arith.addf %22, %23 : vector<8x32xf32>
    %c0_10 = arith.constant 0 : index
    %c0_11 = arith.constant 0 : index
    %25 = vector.load %arg4[%c0_10, %c0_11] : memref<8x32xf32, #tpu.memory_space<vmem>>, vector<8x32xf32>
    tpu.vector_store %arg4[%c0_10, %c0_11], %24 {strides = array<i32>} : memref<8x32xf32, #tpu.memory_space<vmem>>, vector<8x32xf32>,
    return
  }
  func.func @transform_0(%arg0: i32) -> (i32, i32) {
    %c0_i32 = arith.constant 0 : i32
    %c0_i32_0 = arith.constant 0 : i32
    return %arg0, %c0_i32 : i32, i32
  }
  func.func @transform_1(%arg0: i32) -> (i32, i32) {
    %c0_i32 = arith.constant 0 : i32
    %c0_i32_0 = arith.constant 0 : i32
    %c0_i32_1 = arith.constant 0 : i32
    return %c0_i32, %c0_i32_0 : i32, i32
  }
  func.func @transform_2(%arg0: i32) -> (i32, i32) {
    %c0_i32 = arith.constant 0 : i32
    %c0_i32_0 = arith.constant 0 : i32
    %c0_i32_1 = arith.constant 0 : i32
    return %c0_i32, %c0_i32_0 : i32, i32
  }
  func.func @transform_3(%arg0: i32) -> (i32, i32) {
    %c0_i32 = arith.constant 0 : i32
    %c0_i32_0 = arith.constant 0 : i32
    return %arg0, %c0_i32 : i32, i32
  }
}

</mosaic_0001>

<llo_original>
// kernel: tpu_custom_call.1
$region0: #{tpu_custom_call.1}
  #allocation0 [shape = 'u32[]', space=smem, size = 0x4, offset = 0x4, fixed_abs, tag = 'smem constant byte address 0x4 - core index']
  #allocation1 [shape = 'u32[144,128]{1,0:T(1,128)}', space=vmem, size = 0x12000, scoped, tag = 'internal scratch']
  %s0 = inlined_call_operand.hbm [shape: f32[16,32], index: 0, kind: input, shape index: {}]
  %s1 = inlined_call_operand.vmem [shape: f32[1,32], index: 1, kind: input, shape index: {}]
  %s2 = inlined_call_operand.vmem [shape: f32[1,32], index: 2, kind: input, shape index: {}]
  %s3 = inlined_call_operand.hbm [shape: f32[16,32], index: 3, kind: output, shape index: {}]
  %s4 = sld [smem:[#allocation0]]
  $region49: #{tpu_custom_call.1} parent=0
    _
  %s6 = ssub.s32 1, %s4
  %s7 = scalar_select 0, %s6, %s4
  $region1: #{tpu_custom_call.1} parent=0
    #allocation2 [shape = 'u8[8192]{0}', space=vmem, size = 0x2000, scoped, tag = 'input window, operand 0']
    #allocation3 [shape = 's32[2]{0}', space=sflag, size = 0x8, scoped, tag = 'scoped memory for tpu_custom_call.1']
    #allocation4 [shape = 's32[2]{0}', space=sflag, size = 0x8, scoped, tag = 'scoped memory for tpu_custom_call.1']
    #allocation5 [shape = 'u8[8192]{0}', space=vmem, size = 0x2000, scoped, tag = 'output window, operand 0']
    %8 = vsyncpa [#allocation3], 0
    %s9 = scalar_lea.sflag [#allocation3], 1
    %10 = vsyncpa %s9, 0
    %11 = vsyncpa [#allocation4], 0
    %s12 = scalar_lea.sflag [#allocation4], 1
    %13 = vsyncpa %s12, 0
    loop: start=0, step=1, limit=4
    $region2: #{tpu_custom_call.1} parent=1 // loop_pre_header
      _
    $region3: #{tpu_custom_call.1} parent=1 // loop_header
      %s15 = sphi 0, %s19
      %p16 = scmp.ge.s32.totalorder %s15, 4
      %s25 = sphi 0, %s27
      %s28 = sphi 0, %s25
      %s29 = sphi 0, %s28
      %s45 = sphi 0, %s29
      %s49 = sphi 0, %s49
      %s51 = sphi 0, %s49
      %s52 = sphi 0, %s51
      %s66 = sphi 0, %s52
      %s70 = sphi 0, %s70
      %s72 = sphi 0, %s70
      %s73 = sphi 0, %s72
      %s87 = sphi 0, %s73
      %s93 = sphi 0, %s95
      %s96 = sphi 0, %s93
      %s97 = sphi 0, %s96
      %s113 = sphi 0, %s97
    $region4: #{tpu_custom_call.1} parent=1 // loop_header_branch
      %18 = sbr.rel (%p16) target = $region8
    $region5: #{tpu_custom_call.1} parent=1 // loop_body
      %s20 = ssub.s32 %s15, 1
      %s21 = ssub.s32 %s15, 2
      %s22 = sadd.s32 %s15, 1
      %s23 = ssub.s32 %s15, %s22
      %p24 = scmp.eq.s32.totalorder %s23, 0
      %s26 = sadd.s32 %s25, 1
      %s27 = scalar_select %p24, %s25, %s26
      %p30 = pneg %p24
      %p31 = scmp.eq.s32.totalorder %s15, 1
      %p32 = por %p30, %p31
      %p33 = scmp.ne.s32.totalorder %s25, %s28
      %p34 = scmp.eq.s32.totalorder %s15, 0
      %p35 = por %p33, %p34
      %p36 = scmp.ne.s32.totalorder %s25, %s28
      %p37 = scmp.eq.s32.totalorder %s20, 1
      %p38 = por %p36, %p37
      %p39 = scmp.ne.s32.totalorder %s28, %s29
      %p40 = scmp.eq.s32.totalorder %s20, 0
      %p41 = por %p39, %p40
      %p42 = scmp.ne.s32.totalorder %s28, %s29
      %p43 = scmp.eq.s32.totalorder %s21, 1
      %p44 = por %p42, %p43
      %p46 = scmp.ne.s32.totalorder %s29, %s45
      %p47 = scmp.eq.s32.totalorder %s21, 0
      %p48 = por %p46, %p47
      %s50 = sadd.s32 %s49, 1
      %p53 = scmp.eq.s32.totalorder %s15, 1
      %p54 = scmp.ne.s32.totalorder %s49, %s51
      %p55 = scmp.eq.s32.totalorder %s15, 0
      %p56 = por %p54, %p55
      %p57 = scmp.ne.s32.totalorder %s49, %s51
      %p58 = scmp.eq.s32.totalorder %s20, 1
      %p59 = por %p57, %p58
      %p60 = scmp.ne.s32.totalorder %s51, %s52
      %p61 = scmp.eq.s32.totalorder %s20, 0
      %p62 = por %p60, %p61
      %p63 = scmp.ne.s32.totalorder %s51, %s52
      %p64 = scmp.eq.s32.totalorder %s21, 1
      %p65 = por %p63, %p64
      %p67 = scmp.ne.s32.totalorder %s52, %s66
      %p68 = scmp.eq.s32.totalorder %s21, 0
      %p69 = por %p67, %p68
      %s71 = sadd.s32 %s70, 1
      %p74 = scmp.eq.s32.totalorder %s15, 1
      %p75 = scmp.ne.s32.totalorder %s70, %s72
      %p76 = scmp.eq.s32.totalorder %s15, 0
      %p77 = por %p75, %p76
      %p78 = scmp.ne.s32.totalorder %s70, %s72
      %p79 = scmp.eq.s32.totalorder %s20, 1
      %p80 = por %p78, %p79
      %p81 = scmp.ne.s32.totalorder %s72, %s73
      %p82 = scmp.eq.s32.totalorder %s20, 0
      %p83 = por %p81, %p82
      %p84 = scmp.ne.s32.totalorder %s72, %s73
      %p85 = scmp.eq.s32.totalorder %s21, 1
      %p86 = por %p84, %p85
      %p88 = scmp.ne.s32.totalorder %s73, %s87
      %p89 = scmp.eq.s32.totalorder %s21, 0
      %p90 = por %p88, %p89
      %s91 = ssub.s32 %s15, %s22
      %p92 = scmp.eq.s32.totalorder %s91, 0
      %s94 = sadd.s32 %s93, 1
      %s95 = scalar_select %p92, %s93, %s94
      %p98 = pneg %p92
      %p99 = scmp.eq.s32.totalorder %s15, 1
      %p100 = por %p98, %p99
      %p101 = scmp.ne.s32.totalorder %s93, %s96
      %p102 = scmp.eq.s32.totalorder %s15, 0
      %p103 = por %p101, %p102
      %p104 = scmp.ne.s32.totalorder %s93, %s96
      %p105 = scmp.eq.s32.totalorder %s20, 1
      %p106 = por %p104, %p105
      %p107 = scmp.ne.s32.totalorder %s96, %s97
      %p108 = scmp.eq.s32.totalorder %s20, 0
      %p109 = por %p107, %p108
      %p110 = scmp.ne.s32.totalorder %s96, %s97
      %p111 = scmp.eq.s32.totalorder %s21, 1
      %p112 = por %p110, %p111
      %p114 = scmp.ne.s32.totalorder %s97, %s113
      %p115 = scmp.eq.s32.totalorder %s21, 0
      %p116 = por %p114, %p115
      %p117 = scmp.le.s32.totalorder 1, %s15
      %p118 = scmp.lt.s32.totalorder %s15, 3
      %p119 = pnand %p117, %p118
      %p120 = pneg %p119
      // Predicated region
      $region9: #{tpu_custom_call.1} parent=5 // pred_check
        _
      $region10: #{tpu_custom_call.1} parent=5 // pred_check_branch
        %122 = sbr.rel (%p119) target = $region12
      $region11: #{tpu_custom_call.1} parent=5 // pred_region
        %s123 = ssub.s32 %s15, 1
        // Predicated region
        $region13: #{tpu_custom_call.1} parent=11 // pred_check
          %p124 = pneg %p62
        $region14: #{tpu_custom_call.1} parent=11 // pred_check_branch
          %126 = sbr.rel (%p124) target = $region16
        $region15: #{tpu_custom_call.1} parent=11 // pred_region
          _
        $region16: #{tpu_custom_call.1} parent=11 // pred_fallthru
          _
        // Predicated region
        $region17: #{tpu_custom_call.1} parent=11 // pred_check
          %p127 = pneg %p83
        $region18: #{tpu_custom_call.1} parent=11 // pred_check_branch
          %129 = sbr.rel (%p127) target = $region20
        $region19: #{tpu_custom_call.1} parent=11 // pred_region
          _
        $region20: #{tpu_custom_call.1} parent=11 // pred_fallthru
          _
      $region12: #{tpu_custom_call.1} parent=5 // pred_fallthru
        _
      %p130 = scmp.lt.s32.totalorder %s15, 2
      // Predicated region
      $region21: #{tpu_custom_call.1} parent=5 // pred_check
        %p131 = pneg %p130
      $region22: #{tpu_custom_call.1} parent=5 // pred_check_branch
        %133 = sbr.rel (%p131) target = $region24
      $region23: #{tpu_custom_call.1} parent=5 // pred_region
        // Predicated region
        $region25: #{tpu_custom_call.1} parent=23 // pred_check
          %p134 = pneg %p35
        $region26: #{tpu_custom_call.1} parent=23 // pred_check_branch
          %136 = sbr.rel (%p134) target = $region28
        $region27: #{tpu_custom_call.1} parent=23 // pred_region
          %s137 = sand.u32 %s25, 1
          %s138 = scalar_lea.sflag [#allocation3], %s137
          %s139 = sand.u32 %s25, 1
          %s140 = smul.addr %s139, 8
          %s141 = scalar_lea.vmem [#allocation2], %s140
          %s143 = ssub.s32 128, 128
          %144 = vsyncadd %s138, %s143
          %s145 = smul.addr %s15, 128
          %s146 = scalar_lea.hbm %s0, %s145
          %s148 = sshll.u32 %s141, 4
          %s149 = int_to_ptr.vmem [resolvable:$true] %s148
          %151 = dma.hbm_to_vmem [thread:$0]  %s146, 128, %s149, %s138
        $region28: #{tpu_custom_call.1} parent=23 // pred_fallthru
          _
      $region24: #{tpu_custom_call.1} parent=5 // pred_fallthru
        _
      %p152 = scmp.le.s32.totalorder 1, %s15
      %p153 = scmp.lt.s32.totalorder %s15, 3
      %p154 = pnand %p152, %p153
      %p155 = pneg %p154
      // Predicated region
      $region29: #{tpu_custom_call.1} parent=5 // pred_check
        _
      $region30: #{tpu_custom_call.1} parent=5 // pred_check_branch
        %157 = sbr.rel (%p154) target = $region32
      $region31: #{tpu_custom_call.1} parent=5 // pred_region
        %s158 = ssub.s32 %s15, 1
        %s159 = sand.u32 %s28, 1
        %s160 = scalar_lea.sflag [#allocation3], %s159
        %s161 = sand.u32 %s28, 1
        %s162 = smul.addr %s161, 8
        %s163 = scalar_lea.vmem [#allocation2], %s162
        // Predicated region
        $region33: #{tpu_custom_call.1} parent=31 // pred_check
          %p164 = pneg %p41
        $region34: #{tpu_custom_call.1} parent=31 // pred_check_branch
          %166 = sbr.rel (%p164) target = $region36
        $region35: #{tpu_custom_call.1} parent=31 // pred_region
          %167 = dma.done %s160, 128
        $region36: #{tpu_custom_call.1} parent=31 // pred_fallthru
          _
        %s168 = sand.u32 %s28, 1
        %s169 = scalar_lea.sflag [#allocation3], %s168
        %s170 = sand.u32 %s28, 1
        %s171 = smul.addr %s170, 8
        %s172 = scalar_lea.vmem [#allocation2], %s171
        %p173 = pneg %p41
        %p174 = pneg %p38
        %p175 = pneg %p62
        %p176 = pneg %p59
        %p177 = pneg %p83
        %p178 = pneg %p80
        %p179 = pneg %p109
        %p180 = pneg %p106
        %s181 = sand.u32 %s96, 1
        %s182 = scalar_lea.sflag [#allocation4], %s181
        %s183 = sand.u32 %s96, 1
        %s184 = smul.addr %s183, 8
        %s185 = scalar_lea.vmem [#allocation5], %s184
        %v186 = vld [vmem:[%s163] sm:$0xff]
        %v187 = vld [vmem:[%s1] sm:$0x1]
        %v188 = vld [vmem:[%s2] sm:$0x1]
        %vm189 = vcmask 261120
        %v190 = vsel %vm189, %v186, 0.0
        %191 = vadd.xlane.f32.xlu0 %v190
        %v192 = vpop.xlane.xlu0 %191
        %v193 = vmul.f32 %v192, 0.03125
        %v194 = vsub.f32 %v186, %v193
        %v195 = vmul.f32 %v194, %v194
        %v196 = vsel %vm189, %v195, 0.0
        %197 = vadd.xlane.f32.xlu0 %v196
        %v198 = vpop.xlane.xlu0 %197
        %v199 = vmul.f32 %v198, 0.032258064
        %v200 = vrsqrt.pop %v199
        %v201 = vmul.f32 %v199, %v200
        %vm202 = vcmp.eq.f32.partialorder %v199, inf
        %v203 = vsel %vm202, %v199, %v201
        %vm204 = vcmp.eq.f32.partialorder %v199, 0.0
        %v205 = vand.u32 %v199, 2147483648
        %v206 = vsel %vm204, %v205, %v203
        %v207 = vadd.f32 %v206, 1e-06
        %v208 = vrcp.pop %v207
        %v209 = vmul.f32 1.0, %v208
        %v210 = vmul.f32 %v194, %v209
        %v212 = vlaneseq
        %v213 = vshrl.u32 %v212, 7
        %v214 = vsub.s32 0, %v213
        %v215 = vrot.slane %v187, %v214
        %v217 = vmul.f32 %v215, %v210
        %v219 = vlaneseq
        %v220 = vshrl.u32 %v219, 7
        %v221 = vsub.s32 0, %v220
        %v222 = vrot.slane %v188, %v221
        %v224 = vadd.f32 %v217, %v222
        %225 = vst.msk [vmem:[%s185] sm:$0xff] %vm189, %v224
        %s226 = sand.u32 %s96, 1
        %s227 = scalar_lea.sflag [#allocation4], %s226
        %s228 = sand.u32 %s96, 1
        %s229 = smul.addr %s228, 8
        %s230 = scalar_lea.vmem [#allocation5], %s229
        // Predicated region
        $region37: #{tpu_custom_call.1} parent=31 // pred_check
          %p231 = pneg %p106
        $region38: #{tpu_custom_call.1} parent=31 // pred_check_branch
          %233 = sbr.rel (%p231) target = $region40
        $region39: #{tpu_custom_call.1} parent=31 // pred_region
          %s235 = ssub.s32 128, 128
          %236 = vsyncadd %s227, %s235
          %s237 = smul.addr %s20, 128
          %s238 = scalar_lea.hbm %s3, %s237
          %s240 = sshll.u32 %s230, 4
          %s241 = int_to_ptr.vmem [resolvable:$true] %s240
          %243 = dma.vmem_to_hbm [thread:$0]  %s241, 128, %s238, %s227
        $region40: #{tpu_custom_call.1} parent=31 // pred_fallthru
          _
      $region32: #{tpu_custom_call.1} parent=5 // pred_fallthru
        _
      %p244 = scmp.le.s32.totalorder 2, %s15
      // Predicated region
      $region41: #{tpu_custom_call.1} parent=5 // pred_check
        %p245 = pneg %p244
      $region42: #{tpu_custom_call.1} parent=5 // pred_check_branch
        %247 = sbr.rel (%p245) target = $region44
      $region43: #{tpu_custom_call.1} parent=5 // pred_region
        %s248 = ssub.s32 %s15, 2
        // Predicated region
        $region45: #{tpu_custom_call.1} parent=43 // pred_check
          %p249 = pneg %p112
        $region46: #{tpu_custom_call.1} parent=43 // pred_check_branch
          %251 = sbr.rel (%p249) target = $region48
        $region47: #{tpu_custom_call.1} parent=43 // pred_region
          %s252 = sand.u32 %s97, 1
          %s253 = scalar_lea.sflag [#allocation4], %s252
          %s254 = sand.u32 %s97, 1
          %s255 = smul.addr %s254, 8
          %s256 = scalar_lea.vmem [#allocation5], %s255
          %257 = dma.done %s253, 128
        $region48: #{tpu_custom_call.1} parent=43 // pred_fallthru
          _
      $region44: #{tpu_custom_call.1} parent=5 // pred_fallthru
        _
    $region6: #{tpu_custom_call.1} parent=1 // loop_footer
      %s19 = sadd.s32 1, %s15
    $region7: #{tpu_custom_call.1} parent=1 // loop_footer_branch
      %14 = sbr.rel target = $region3
    $region8: #{tpu_custom_call.1} parent=1 // loop_exit
      _
    %258 = vsyncpa [#allocation3], 1
    %s259 = scalar_lea.sflag [#allocation3], 1
    %260 = vsyncpa %s259, 1
    %261 = vsyncpa [#allocation4], 1
    %s262 = scalar_lea.sflag [#allocation4], 1
    %263 = vsyncpa %s262, 1

</llo_original>
